<compile_context>
chip_gen: v5e
topology: v5e:2x2
jax: 0.10.0
libtpu: 0.0.40
codegen_flags: <defaults>
</compile_context>

<pallas_src>
import jax
import jax.numpy as jnp
from jax.experimental import pallas as pl
from jax.experimental.pallas import tpu as pltpu

# ---------------- model dimensions ----------------
V = 32   # vocab_size
C = 16   # class_size
E = 32   # embedding_size
H = 32   # hidden_size
B = 8    # batch
S = 8    # sequence length
LN_EPS = 1e-5

# slab row offsets (all multiples of 8 -> sublane-aligned static slices)
_ROW_TBL = 0          # [V,  4H] folded embedding/LN1/W_ih/bias table
_ROW_WHH = V          # [H,  4H] W_hh (pre-transposed)
_ROW_FCW = V + H      # [H,  128] LN2-folded FC weight, zero-padded C->128
_ROW_FCB = V + 2 * H  # [1,  128] LN2-folded FC bias,   zero-padded C->128
_SLAB_ROWS = ((V + 2 * H + 1 + 7) // 8) * 8   # 104 (pad to multiple of 8)


def _layernorm(x, gamma, beta):
    mu = jnp.mean(x, axis=-1, keepdims=True)
    var = jnp.mean((x - mu) ** 2, axis=-1, keepdims=True)
    return (x - mu) * jax.lax.rsqrt(var + LN_EPS) * gamma + beta


def names_lstm_kernel(idx_ref,     # [S*B, 1] int32, time-major flattened ids
                      slab_ref,    # [_SLAB_ROWS, 128] f32 packed parameters
                      out_ref):    # [B, 128] f32 (lane-dense; cols >= C are zero)
    sb = idx_ref.shape[0]

    # ---- static, sublane-aligned views into the packed parameter slab ----
    tbl = slab_ref[_ROW_TBL:_ROW_TBL + V, :]          # [V, 4H]
    w_hh = slab_ref[_ROW_WHH:_ROW_WHH + H, :]         # [H, 4H]
    fc_w = slab_ref[_ROW_FCW:_ROW_FCW + H, :]         # [H, 128]
    fc_b = slab_ref[_ROW_FCB:_ROW_FCB + 1, :]         # [1, 128]

    # ---- single one-hot matmul gives all pre-gates for every (t, b) ----
    ids = idx_ref[...]                                                    # [S*B, 1]
    vocab_iota = jax.lax.broadcasted_iota(jnp.int32, (sb, V), 1)          # [S*B, V]
    one_hot = (ids == vocab_iota).astype(jnp.float32)
    pre_gates = jnp.dot(one_hot, tbl,
                        preferred_element_type=jnp.float32)               # [S*B, 4H]

    # ---- LSTM recurrence: only h @ W_hh on the serial critical path ----
    # TODO(synk): optionally hold W_hh resident in the MXU across the S steps via
    # pltpu.matmul_push_rhs / matmul_acc_lhs / matmul_pop; jnp.dot kept as the
    # validated portable path.
    hstate = jnp.zeros((B, H), jnp.float32)
    cstate = jnp.zeros((B, H), jnp.float32)
    for t in range(S):  # S static & small -> unrolled straight-line code
        gates = pre_gates[t * B:(t + 1) * B, :] + jnp.dot(
            hstate, w_hh, preferred_element_type=jnp.float32)             # [B, 4H]
        sig = jax.nn.sigmoid(gates)   # one full-vreg EUP pass
        tnh = jnp.tanh(gates)         # one full-vreg EUP pass
        i_g = sig[:, 0 * H:1 * H]
        f_g = sig[:, 1 * H:2 * H]
        g_g = tnh[:, 2 * H:3 * H]
        o_g = sig[:, 3 * H:4 * H]
        cstate = f_g * cstate + i_g * g_g
        hstate = o_g * jnp.tanh(cstate)

    # ---- LN2 normalization (affine folded into FC) + final Linear ----
    mu = jnp.mean(hstate, axis=-1, keepdims=True)
    var = jnp.mean((hstate - mu) ** 2, axis=-1, keepdims=True)
    h_norm = (hstate - mu) * jax.lax.rsqrt(var + LN_EPS)                  # [B, H]
    out_ref[...] = jnp.dot(h_norm, fc_w,
                           preferred_element_type=jnp.float32) + fc_b     # [B, 128]


def prepare_params(params):
    """One-time fold of all model parameters into a single lane-dense f32 slab.

    Run once per weight update, NOT per forward call.
    Returns slab of shape [_SLAB_ROWS, 128]."""
    (emb_tbl, ln1_g, ln1_b, w_ih, w_hh, b_ih, b_hh,
     ln2_g, ln2_b, fc_w, fc_b) = params

    # LN1 + input projection + summed LSTM biases folded into the table (exact).
    tbl_ln = _layernorm(emb_tbl, ln1_g, ln1_b)                  # [V, E]
    tbl_proj = tbl_ln @ w_ih.T + (b_ih + b_hh)                  # [V, 4H]

    w_hh_t = w_hh.T                                             # [H, 4H]

    # LN2 affine folded into FC (exact):
    #   (h_norm*g + b) @ fc_w.T + fc_b = h_norm @ (g[:,None]*fc_w.T) + (b@fc_w.T + fc_b)
    g = ln2_g.reshape(H)
    b = ln2_b.reshape(H)
    fc_w_fold = (fc_w * g[None, :]).T                           # [H, C]
    fc_b_fold = fc_b.reshape(C) + b @ fc_w.T                    # [C]

    # Lane-dense padding of the FC block to 128 columns (free on the MXU,
    # makes the output store an unmasked full-vreg vst).
    fc_w_pad = jnp.zeros((H, 4 * H), jnp.float32).at[:, :C].set(fc_w_fold)
    fc_b_pad = jnp.zeros((1, 4 * H), jnp.float32).at[0, :C].set(fc_b_fold)

    slab = jnp.concatenate([tbl_proj, w_hh_t, fc_w_pad, fc_b_pad], axis=0)
    pad_rows = _SLAB_ROWS - slab.shape[0]
    if pad_rows:
        slab = jnp.concatenate(
            [slab, jnp.zeros((pad_rows, 4 * H), jnp.float32)], axis=0)
    return slab.astype(jnp.float32)                             # [_SLAB_ROWS, 128]


def names_classifier_lstm(indices, slab):
    """indices: [B, S] int32 token ids; slab: prepare_params() output.
    Returns logits [B, C]."""
    b, s = indices.shape
    # time-major flatten of token ids: row t*B + b
    idx_flat = indices.T.reshape(s * b, 1).astype(jnp.int32)    # [S*B, 1]

    out_pad = pl.pallas_call(
        names_lstm_kernel,
        out_shape=jax.ShapeDtypeStruct((b, 4 * H), jnp.float32),   # lane-dense [B,128]
        in_specs=[pl.BlockSpec(memory_space=pltpu.MemorySpace.VMEM)] * 2,
        out_specs=pl.BlockSpec(memory_space=pltpu.MemorySpace.VMEM),
    )(idx_flat, slab)
    return out_pad[:, :C]
    # TODO(synk): for large deployment batches, add a batch-tile grid axis marked
    # "parallel" (dimension_semantics) sized to 128 rows on v5e / 256 on v6e/v7x
    # so the one-hot matmul fills the MXU and v7x's two TensorCores both run.


def init_params(key):
    """Deterministic parameter init mirroring PyTorch shapes/defaults."""
    ks = jax.random.split(key, 6)
    k_lstm = 1.0 / jnp.sqrt(H)
    k_fc = 1.0 / jnp.sqrt(H)

    emb_tbl = jax.random.normal(ks[0], (V, E), jnp.float32)
    emb_tbl = emb_tbl.at[0].set(0.0)                    # padding_idx=0

    ln1_g = jnp.ones((1, E), jnp.float32)
    ln1_b = jnp.zeros((1, E), jnp.float32)

    w_ih = jax.random.uniform(ks[1], (4 * H, E), jnp.float32, -k_lstm, k_lstm)
    w_hh = jax.random.uniform(ks[2], (4 * H, H), jnp.float32, -k_lstm, k_lstm)
    b_ih = jax.random.uniform(ks[3], (1, 4 * H), jnp.float32, -k_lstm, k_lstm)
    b_hh = jax.random.uniform(ks[4], (1, 4 * H), jnp.float32, -k_lstm, k_lstm)

    ln2_g = jnp.ones((1, H), jnp.float32)
    ln2_b = jnp.zeros((1, H), jnp.float32)

    fc_w = jax.random.uniform(ks[5], (C, H), jnp.float32, -k_fc, k_fc)
    fc_b = jnp.zeros((1, C), jnp.float32)

    return (emb_tbl, ln1_g, ln1_b, w_ih, w_hh, b_ih, b_hh,
            ln2_g, ln2_b, fc_w, fc_b)


def reference_forward(indices, params):
    """Pure-JAX reference of the unfused forward pass (for validation)."""
    (emb_tbl, ln1_g, ln1_b, w_ih, w_hh, b_ih, b_hh,
     ln2_g, ln2_b, fc_w, fc_b) = params
    b, s = indices.shape
    x = jnp.take(emb_tbl, indices, axis=0)                       # [B, S, E]
    x = _layernorm(x, ln1_g.reshape(E), ln1_b.reshape(E))
    h = jnp.zeros((b, H), jnp.float32)
    c = jnp.zeros((b, H), jnp.float32)
    bias = (b_ih + b_hh).reshape(4 * H)
    for t in range(s):
        gates = x[:, t, :] @ w_ih.T + h @ w_hh.T + bias
        i_g = jax.nn.sigmoid(gates[:, 0 * H:1 * H])
        f_g = jax.nn.sigmoid(gates[:, 1 * H:2 * H])
        g_g = jnp.tanh(gates[:, 2 * H:3 * H])
        o_g = jax.nn.sigmoid(gates[:, 3 * H:4 * H])
        c = f_g * c + i_g * g_g
        h = o_g * jnp.tanh(c)
    h = _layernorm(h, ln2_g.reshape(H), ln2_b.reshape(H))
    return h @ fc_w.T + fc_b


if __name__ == "__main__":
    key = jax.random.PRNGKey(0)
    k_idx, k_par = jax.random.split(key)

    # token ids in [0, V); left-pad a couple of positions with 0 (padding idx)
    indices = jax.random.randint(k_idx, (B, S), 0, V, dtype=jnp.int32)
    indices = indices.at[:, :2].set(0)

    params = init_params(k_par)
    slab = jax.block_until_ready(prepare_params(params))   # one-time fold

    out = names_classifier_lstm(indices, slab)
    out = jax.block_until_ready(out)

    ref = reference_forward(indices, params)
    assert out.shape == (B, C), out.shape
    assert jnp.allclose(out, ref, atol=1e-4, rtol=1e-4), (
        f"max abs err {jnp.max(jnp.abs(out - ref))}")

    print("KERNEL_OK")
</pallas_src>

<mosaic_0001>
module attributes {stable_mosaic.version = 11 : i64} {
  func.func @names_lstm_kernel(%arg0: memref<64x1xi32, #tpu.memory_space<vmem>>, %arg1: memref<104x128xf32, #tpu.memory_space<vmem>>, %arg2: memref<8x128xf32, #tpu.memory_space<vmem>>) attributes {dimension_semantics = [], scalar_prefetch = 0 : i64, scratch_operands = 0 : i64, tpu.core_type = #tpu.core_type<tc>} {
    %c0 = arith.constant 0 : index
    %c0_0 = arith.constant 0 : index
    %0 = vector.load %arg1[%c0, %c0_0] : memref<104x128xf32, #tpu.memory_space<vmem>>, vector<32x128xf32>
    %c32 = arith.constant 32 : index
    %c0_1 = arith.constant 0 : index
    %1 = vector.load %arg1[%c32, %c0_1] : memref<104x128xf32, #tpu.memory_space<vmem>>, vector<32x128xf32>
    %c64 = arith.constant 64 : index
    %c0_2 = arith.constant 0 : index
    %2 = vector.load %arg1[%c64, %c0_2] : memref<104x128xf32, #tpu.memory_space<vmem>>, vector<32x128xf32>
    %c96 = arith.constant 96 : index
    %c0_3 = arith.constant 0 : index
    %3 = vector.load %arg1[%c96, %c0_3] : memref<104x128xf32, #tpu.memory_space<vmem>>, vector<1x128xf32>
    %c0_4 = arith.constant 0 : index
    %c0_5 = arith.constant 0 : index
    %4 = vector.load %arg0[%c0_4, %c0_5] : memref<64x1xi32, #tpu.memory_space<vmem>>, vector<64x1xi32>
    %5 = tpu.iota {dimensions = array<i32: 1>} : vector<64x32xi32>
    %6 = vector.broadcast %4 : vector<64x1xi32> to vector<64x32xi32>
    %7 = arith.cmpi eq, %6, %5 : vector<64x32xi32>
    %8 = arith.extui %7 : vector<64x32xi1> to vector<64x32xi32>
    %9 = arith.sitofp %8 : vector<64x32xi32> to vector<64x32xf32>
    %cst = arith.constant dense<0.000000e+00> : vector<64x128xf32>
    %10 = tpu.matmul %9, %0, %cst {dimension_numbers = #tpu.dot_dimension_numbers<[1], [0], [0], [1], [0, 0, 1, 1], [], []>} : vector<64x32xf32>, vector<32x128xf32>, vector<64x128xf32> -> vector<64x128xf32>
    %cst_6 = arith.constant 0.000000e+00 : f32
    %11 = vector.broadcast %cst_6 : f32 to vector<8x32xf32>
    %cst_7 = arith.constant 0.000000e+00 : f32
    %12 = vector.broadcast %cst_7 : f32 to vector<8x32xf32>
    %13 = vector.extract_strided_slice %10 {offsets = [0, 0], sizes = [8, 128], strides = [1, 1]} : vector<64x128xf32> to vector<8x128xf32>
    %cst_8 = arith.constant dense<0.000000e+00> : vector<8x128xf32>
    %14 = tpu.matmul %11, %1, %cst_8 {dimension_numbers = #tpu.dot_dimension_numbers<[1], [0], [0], [1], [0, 0, 1, 1], [], []>} : vector<8x32xf32>, vector<32x128xf32>, vector<8x128xf32> -> vector<8x128xf32>
    %15 = arith.addf %13, %14 : vector<8x128xf32>
    %16 = arith.negf %15 : vector<8x128xf32>
    %17 = math.exp %16 : vector<8x128xf32>
    %cst_9 = arith.constant 1.000000e+00 : f32
    %18 = vector.broadcast %cst_9 : f32 to vector<8x128xf32>
    %19 = arith.addf %18, %17 : vector<8x128xf32>
    %20 = arith.divf %18, %19 : vector<8x128xf32>
    %21 = math.tanh %15 : vector<8x128xf32>
    %22 = vector.extract_strided_slice %20 {offsets = [0, 0], sizes = [8, 32], strides = [1, 1]} : vector<8x128xf32> to vector<8x32xf32>
    %23 = vector.extract_strided_slice %20 {offsets = [0, 32], sizes = [8, 32], strides = [1, 1]} : vector<8x128xf32> to vector<8x32xf32>
    %24 = vector.extract_strided_slice %21 {offsets = [0, 64], sizes = [8, 32], strides = [1, 1]} : vector<8x128xf32> to vector<8x32xf32>
    %25 = vector.extract_strided_slice %20 {offsets = [0, 96], sizes = [8, 32], strides = [1, 1]} : vector<8x128xf32> to vector<8x32xf32>
    %26 = arith.mulf %23, %12 : vector<8x32xf32>
    %27 = arith.mulf %22, %24 : vector<8x32xf32>
    %28 = arith.addf %26, %27 : vector<8x32xf32>
    %29 = math.tanh %28 : vector<8x32xf32>
    %30 = arith.mulf %25, %29 : vector<8x32xf32>
    %31 = vector.extract_strided_slice %10 {offsets = [8, 0], sizes = [8, 128], strides = [1, 1]} : vector<64x128xf32> to vector<8x128xf32>
    %cst_10 = arith.constant dense<0.000000e+00> : vector<8x128xf32>
    %32 = tpu.matmul %30, %1, %cst_10 {dimension_numbers = #tpu.dot_dimension_numbers<[1], [0], [0], [1], [0, 0, 1, 1], [], []>} : vector<8x32xf32>, vector<32x128xf32>, vector<8x128xf32> -> vector<8x128xf32>
    %33 = arith.addf %31, %32 : vector<8x128xf32>
    %34 = arith.negf %33 : vector<8x128xf32>
    %35 = math.exp %34 : vector<8x128xf32>
    %cst_11 = arith.constant 1.000000e+00 : f32
    %36 = vector.broadcast %cst_11 : f32 to vector<8x128xf32>
    %37 = arith.addf %36, %35 : vector<8x128xf32>
    %38 = arith.divf %36, %37 : vector<8x128xf32>
    %39 = math.tanh %33 : vector<8x128xf32>
    %40 = vector.extract_strided_slice %38 {offsets = [0, 0], sizes = [8, 32], strides = [1, 1]} : vector<8x128xf32> to vector<8x32xf32>
    %41 = vector.extract_strided_slice %38 {offsets = [0, 32], sizes = [8, 32], strides = [1, 1]} : vector<8x128xf32> to vector<8x32xf32>
    %42 = vector.extract_strided_slice %39 {offsets = [0, 64], sizes = [8, 32], strides = [1, 1]} : vector<8x128xf32> to vector<8x32xf32>
    %43 = vector.extract_strided_slice %38 {offsets = [0, 96], sizes = [8, 32], strides = [1, 1]} : vector<8x128xf32> to vector<8x32xf32>
    %44 = arith.mulf %41, %28 : vector<8x32xf32>
    %45 = arith.mulf %40, %42 : vector<8x32xf32>
    %46 = arith.addf %44, %45 : vector<8x32xf32>
    %47 = math.tanh %46 : vector<8x32xf32>
    %48 = arith.mulf %43, %47 : vector<8x32xf32>
    %49 = vector.extract_strided_slice %10 {offsets = [16, 0], sizes = [8, 128], strides = [1, 1]} : vector<64x128xf32> to vector<8x128xf32>
    %cst_12 = arith.constant dense<0.000000e+00> : vector<8x128xf32>
    %50 = tpu.matmul %48, %1, %cst_12 {dimension_numbers = #tpu.dot_dimension_numbers<[1], [0], [0], [1], [0, 0, 1, 1], [], []>} : vector<8x32xf32>, vector<32x128xf32>, vector<8x128xf32> -> vector<8x128xf32>
    %51 = arith.addf %49, %50 : vector<8x128xf32>
    %52 = arith.negf %51 : vector<8x128xf32>
    %53 = math.exp %52 : vector<8x128xf32>
    %cst_13 = arith.constant 1.000000e+00 : f32
    %54 = vector.broadcast %cst_13 : f32 to vector<8x128xf32>
    %55 = arith.addf %54, %53 : vector<8x128xf32>
    %56 = arith.divf %54, %55 : vector<8x128xf32>
    %57 = math.tanh %51 : vector<8x128xf32>
    %58 = vector.extract_strided_slice %56 {offsets = [0, 0], sizes = [8, 32], strides = [1, 1]} : vector<8x128xf32> to vector<8x32xf32>
    %59 = vector.extract_strided_slice %56 {offsets = [0, 32], sizes = [8, 32], strides = [1, 1]} : vector<8x128xf32> to vector<8x32xf32>
    %60 = vector.extract_strided_slice %57 {offsets = [0, 64], sizes = [8, 32], strides = [1, 1]} : vector<8x128xf32> to vector<8x32xf32>
    %61 = vector.extract_strided_slice %56 {offsets = [0, 96], sizes = [8, 32], strides = [1, 1]} : vector<8x128xf32> to vector<8x32xf32>
    %62 = arith.mulf %59, %46 : vector<8x32xf32>
    %63 = arith.mulf %58, %60 : vector<8x32xf32>
    %64 = arith.addf %62, %63 : vector<8x32xf32>
    %65 = math.tanh %64 : vector<8x32xf32>
    %66 = arith.mulf %61, %65 : vector<8x32xf32>
    %67 = vector.extract_strided_slice %10 {offsets = [24, 0], sizes = [8, 128], strides = [1, 1]} : vector<64x128xf32> to vector<8x128xf32>
    %cst_14 = arith.constant dense<0.000000e+00> : vector<8x128xf32>
    %68 = tpu.matmul %66, %1, %cst_14 {dimension_numbers = #tpu.dot_dimension_numbers<[1], [0], [0], [1], [0, 0, 1, 1], [], []>} : vector<8x32xf32>, vector<32x128xf32>, vector<8x128xf32> -> vector<8x128xf32>
    %69 = arith.addf %67, %68 : vector<8x128xf32>
    %70 = arith.negf %69 : vector<8x128xf32>
    %71 = math.exp %70 : vector<8x128xf32>
    %cst_15 = arith.constant 1.000000e+00 : f32
    %72 = vector.broadcast %cst_15 : f32 to vector<8x128xf32>
    %73 = arith.addf %72, %71 : vector<8x128xf32>
    %74 = arith.divf %72, %73 : vector<8x128xf32>
    %75 = math.tanh %69 : vector<8x128xf32>
    %76 = vector.extract_strided_slice %74 {offsets = [0, 0], sizes = [8, 32], strides = [1, 1]} : vector<8x128xf32> to vector<8x32xf32>
    %77 = vector.extract_strided_slice %74 {offsets = [0, 32], sizes = [8, 32], strides = [1, 1]} : vector<8x128xf32> to vector<8x32xf32>
    %78 = vector.extract_strided_slice %75 {offsets = [0, 64], sizes = [8, 32], strides = [1, 1]} : vector<8x128xf32> to vector<8x32xf32>
    %79 = vector.extract_strided_slice %74 {offsets = [0, 96], sizes = [8, 32], strides = [1, 1]} : vector<8x128xf32> to vector<8x32xf32>
    %80 = arith.mulf %77, %64 : vector<8x32xf32>
    %81 = arith.mulf %76, %78 : vector<8x32xf32>
    %82 = arith.addf %80, %81 : vector<8x32xf32>
    %83 = math.tanh %82 : vector<8x32xf32>
    %84 = arith.mulf %79, %83 : vector<8x32xf32>
    %85 = vector.extract_strided_slice %10 {offsets = [32, 0], sizes = [8, 128], strides = [1, 1]} : vector<64x128xf32> to vector<8x128xf32>
    %cst_16 = arith.constant dense<0.000000e+00> : vector<8x128xf32>
    %86 = tpu.matmul %84, %1, %cst_16 {dimension_numbers = #tpu.dot_dimension_numbers<[1], [0], [0], [1], [0, 0, 1, 1], [], []>} : vector<8x32xf32>, vector<32x128xf32>, vector<8x128xf32> -> vector<8x128xf32>
    %87 = arith.addf %85, %86 : vector<8x128xf32>
    %88 = arith.negf %87 : vector<8x128xf32>
    %89 = math.exp %88 : vector<8x128xf32>
    %cst_17 = arith.constant 1.000000e+00 : f32
    %90 = vector.broadcast %cst_17 : f32 to vector<8x128xf32>
    %91 = arith.addf %90, %89 : vector<8x128xf32>
    %92 = arith.divf %90, %91 : vector<8x128xf32>
    %93 = math.tanh %87 : vector<8x128xf32>
    %94 = vector.extract_strided_slice %92 {offsets = [0, 0], sizes = [8, 32], strides = [1, 1]} : vector<8x128xf32> to vector<8x32xf32>
    %95 = vector.extract_strided_slice %92 {offsets = [0, 32], sizes = [8, 32], strides = [1, 1]} : vector<8x128xf32> to vector<8x32xf32>
    %96 = vector.extract_strided_slice %93 {offsets = [0, 64], sizes = [8, 32], strides = [1, 1]} : vector<8x128xf32> to vector<8x32xf32>
    %97 = vector.extract_strided_slice %92 {offsets = [0, 96], sizes = [8, 32], strides = [1, 1]} : vector<8x128xf32> to vector<8x32xf32>
    %98 = arith.mulf %95, %82 : vector<8x32xf32>
    %99 = arith.mulf %94, %96 : vector<8x32xf32>
    %100 = arith.addf %98, %99 : vector<8x32xf32>
    %101 = math.tanh %100 : vector<8x32xf32>
    %102 = arith.mulf %97, %101 : vector<8x32xf32>
    %103 = vector.extract_strided_slice %10 {offsets = [40, 0], sizes = [8, 128], strides = [1, 1]} : vector<64x128xf32> to vector<8x128xf32>
    %cst_18 = arith.constant dense<0.000000e+00> : vector<8x128xf32>
    %104 = tpu.matmul %102, %1, %cst_18 {dimension_numbers = #tpu.dot_dimension_numbers<[1], [0], [0], [1], [0, 0, 1, 1], [], []>} : vector<8x32xf32>, vector<32x128xf32>, vector<8x128xf32> -> vector<8x128xf32>
    %105 = arith.addf %103, %104 : vector<8x128xf32>
    %106 = arith.negf %105 : vector<8x128xf32>
    %107 = math.exp %106 : vector<8x128xf32>
    %cst_19 = arith.constant 1.000000e+00 : f32
    %108 = vector.broadcast %cst_19 : f32 to vector<8x128xf32>
    %109 = arith.addf %108, %107 : vector<8x128xf32>
    %110 = arith.divf %108, %109 : vector<8x128xf32>
    %111 = math.tanh %105 : vector<8x128xf32>
    %112 = vector.extract_strided_slice %110 {offsets = [0, 0], sizes = [8, 32], strides = [1, 1]} : vector<8x128xf32> to vector<8x32xf32>
    %113 = vector.extract_strided_slice %110 {offsets = [0, 32], sizes = [8, 32], strides = [1, 1]} : vector<8x128xf32> to vector<8x32xf32>
    %114 = vector.extract_strided_slice %111 {offsets = [0, 64], sizes = [8, 32], strides = [1, 1]} : vector<8x128xf32> to vector<8x32xf32>
    %115 = vector.extract_strided_slice %110 {offsets = [0, 96], sizes = [8, 32], strides = [1, 1]} : vector<8x128xf32> to vector<8x32xf32>
    %116 = arith.mulf %113, %100 : vector<8x32xf32>
    %117 = arith.mulf %112, %114 : vector<8x32xf32>
    %118 = arith.addf %116, %117 : vector<8x32xf32>
    %119 = math.tanh %118 : vector<8x32xf32>
    %120 = arith.mulf %115, %119 : vector<8x32xf32>
    %121 = vector.extract_strided_slice %10 {offsets = [48, 0], sizes = [8, 128], strides = [1, 1]} : vector<64x128xf32> to vector<8x128xf32>
    %cst_20 = arith.constant dense<0.000000e+00> : vector<8x128xf32>
    %122 = tpu.matmul %120, %1, %cst_20 {dimension_numbers = #tpu.dot_dimension_numbers<[1], [0], [0], [1], [0, 0, 1, 1], [], []>} : vector<8x32xf32>, vector<32x128xf32>, vector<8x128xf32> -> vector<8x128xf32>
    %123 = arith.addf %121, %122 : vector<8x128xf32>
    %124 = arith.negf %123 : vector<8x128xf32>
    %125 = math.exp %124 : vector<8x128xf32>
    %cst_21 = arith.constant 1.000000e+00 : f32
    %126 = vector.broadcast %cst_21 : f32 to vector<8x128xf32>
    %127 = arith.addf %126, %125 : vector<8x128xf32>
    %128 = arith.divf %126, %127 : vector<8x128xf32>
    %129 = math.tanh %123 : vector<8x128xf32>
    %130 = vector.extract_strided_slice %128 {offsets = [0, 0], sizes = [8, 32], strides = [1, 1]} : vector<8x128xf32> to vector<8x32xf32>
    %131 = vector.extract_strided_slice %128 {offsets = [0, 32], sizes = [8, 32], strides = [1, 1]} : vector<8x128xf32> to vector<8x32xf32>
    %132 = vector.extract_strided_slice %129 {offsets = [0, 64], sizes = [8, 32], strides = [1, 1]} : vector<8x128xf32> to vector<8x32xf32>
    %133 = vector.extract_strided_slice %128 {offsets = [0, 96], sizes = [8, 32], strides = [1, 1]} : vector<8x128xf32> to vector<8x32xf32>
    %134 = arith.mulf %131, %118 : vector<8x32xf32>
    %135 = arith.mulf %130, %132 : vector<8x32xf32>
    %136 = arith.addf %134, %135 : vector<8x32xf32>
    %137 = math.tanh %136 : vector<8x32xf32>
    %138 = arith.mulf %133, %137 : vector<8x32xf32>
    %139 = vector.extract_strided_slice %10 {offsets = [56, 0], sizes = [8, 128], strides = [1, 1]} : vector<64x128xf32> to vector<8x128xf32>
    %cst_22 = arith.constant dense<0.000000e+00> : vector<8x128xf32>
    %140 = tpu.matmul %138, %1, %cst_22 {dimension_numbers = #tpu.dot_dimension_numbers<[1], [0], [0], [1], [0, 0, 1, 1], [], []>} : vector<8x32xf32>, vector<32x128xf32>, vector<8x128xf32> -> vector<8x128xf32>
    %141 = arith.addf %139, %140 : vector<8x128xf32>
    %142 = arith.negf %141 : vector<8x128xf32>
    %143 = math.exp %142 : vector<8x128xf32>
    %cst_23 = arith.constant 1.000000e+00 : f32
    %144 = vector.broadcast %cst_23 : f32 to vector<8x128xf32>
    %145 = arith.addf %144, %143 : vector<8x128xf32>
    %146 = arith.divf %144, %145 : vector<8x128xf32>
    %147 = math.tanh %141 : vector<8x128xf32>
    %148 = vector.extract_strided_slice %146 {offsets = [0, 0], sizes = [8, 32], strides = [1, 1]} : vector<8x128xf32> to vector<8x32xf32>
    %149 = vector.extract_strided_slice %146 {offsets = [0, 32], sizes = [8, 32], strides = [1, 1]} : vector<8x128xf32> to vector<8x32xf32>
    %150 = vector.extract_strided_slice %147 {offsets = [0, 64], sizes = [8, 32], strides = [1, 1]} : vector<8x128xf32> to vector<8x32xf32>
    %151 = vector.extract_strided_slice %146 {offsets = [0, 96], sizes = [8, 32], strides = [1, 1]} : vector<8x128xf32> to vector<8x32xf32>
    %152 = arith.mulf %149, %136 : vector<8x32xf32>
    %153 = arith.mulf %148, %150 : vector<8x32xf32>
    %154 = arith.addf %152, %153 : vector<8x32xf32>
    %155 = math.tanh %154 : vector<8x32xf32>
    %156 = arith.mulf %151, %155 : vector<8x32xf32>
    %cst_24 = arith.constant dense<0.000000e+00> : vector<8xf32>
    %157 = vector.multi_reduction <add>, %156, %cst_24 [1] : vector<8x32xf32> to vector<8xf32>
    %158 = vector.shape_cast %157 : vector<8xf32> to vector<8x1xf32>
    %cst_25 = arith.constant 3.200000e+01 : f32
    %159 = vector.broadcast %cst_25 : f32 to vector<8x1xf32>
    %160 = arith.divf %158, %159 : vector<8x1xf32>
    %161 = vector.broadcast %160 : vector<8x1xf32> to vector<8x32xf32>
    %162 = arith.subf %156, %161 : vector<8x32xf32>
    %163 = arith.mulf %162, %162 : vector<8x32xf32>
    %cst_26 = arith.constant dense<0.000000e+00> : vector<8xf32>
    %164 = vector.multi_reduction <add>, %163, %cst_26 [1] : vector<8x32xf32> to vector<8xf32>
    %165 = vector.shape_cast %164 : vector<8xf32> to vector<8x1xf32>
    %cst_27 = arith.constant 3.200000e+01 : f32
    %166 = vector.broadcast %cst_27 : f32 to vector<8x1xf32>
    %167 = arith.divf %165, %166 : vector<8x1xf32>
    %168 = vector.broadcast %160 : vector<8x1xf32> to vector<8x32xf32>
    %169 = arith.subf %156, %168 : vector<8x32xf32>
    %cst_28 = arith.constant 9.99999974E-6 : f32
    %170 = vector.broadcast %cst_28 : f32 to vector<8x1xf32>
    %171 = arith.addf %167, %170 : vector<8x1xf32>
    %172 = math.rsqrt %171 : vector<8x1xf32>
    %173 = vector.broadcast %172 : vector<8x1xf32> to vector<8x32xf32>
    %174 = arith.mulf %169, %173 : vector<8x32xf32>
    %cst_29 = arith.constant dense<0.000000e+00> : vector<8x128xf32>
    %175 = tpu.matmul %174, %2, %cst_29 {dimension_numbers = #tpu.dot_dimension_numbers<[1], [0], [0], [1], [0, 0, 1, 1], [], []>} : vector<8x32xf32>, vector<32x128xf32>, vector<8x128xf32> -> vector<8x128xf32>
    %176 = vector.broadcast %3 : vector<1x128xf32> to vector<8x128xf32>
    %177 = arith.addf %175, %176 : vector<8x128xf32>
    %c0_30 = arith.constant 0 : index
    %c0_31 = arith.constant 0 : index
    %178 = vector.load %arg2[%c0_30, %c0_31] : memref<8x128xf32, #tpu.memory_space<vmem>>, vector<8x128xf32>
    tpu.vector_store %arg2[%c0_30, %c0_31], %177 {strides = array<i32>} : memref<8x128xf32, #tpu.memory_space<vmem>>, vector<8x128xf32>,
    return
  }
}

</mosaic_0001>

<llo_original>
// kernel: tpu_custom_call.1
$region0: #{tpu_custom_call.1}
  #allocation0 [shape = 'u32[]', space=smem, size = 0x4, offset = 0x4, fixed_abs, tag = 'smem constant byte address 0x4 - core index']
  #allocation1 [shape = 'u32[72,128]{1,0:T(1,128)}', space=vmem, size = 0x9000, scoped, tag = 'internal scratch']
  %s0 = inlined_call_operand.vmem [shape: s32[64,1], index: 0, kind: input, shape index: {}]
  %s1 = inlined_call_operand.hbm [shape: f32[104,128], index: 1, kind: input, shape index: {}]
  %s2 = inlined_call_operand.hbm [shape: f32[8,128], index: 2, kind: output, shape index: {}]
  %s3 = sld [smem:[#allocation0]]
  $region22: #{tpu_custom_call.1} parent=0
    _
  %s5 = ssub.s32 1, %s3
  %s6 = scalar_select 0, %s5, %s3
  $region1: #{tpu_custom_call.1} parent=0
    #allocation2 [shape = 'u8[53248]{0}', space=vmem, size = 0xd000, scoped, tag = 'input window, operand 1, single buffered']
    #allocation3 [shape = 's32[1]{0}', space=sflag, size = 0x4, scoped, tag = 'scoped memory for tpu_custom_call.1']
    #allocation4 [shape = 's32[1]{0}', space=sflag, size = 0x4, scoped, tag = 'scoped memory for tpu_custom_call.1']
    #allocation5 [shape = 'u8[4096]{0}', space=vmem, size = 0x1000, scoped, tag = 'output window, operand 0, single buffered']
    %7 = vsyncpa [#allocation3], 0
    %8 = vsyncpa [#allocation4], 0
    // Predicated region
    $region2: #{tpu_custom_call.1} parent=1 // pred_check
      _
    $region3: #{tpu_custom_call.1} parent=1 // pred_check_branch
      %10 = sbr.rel (0) target = $region5
    $region4: #{tpu_custom_call.1} parent=1 // pred_region
      _
    $region5: #{tpu_custom_call.1} parent=1 // pred_fallthru
      _
    // Predicated region
    $region6: #{tpu_custom_call.1} parent=1 // pred_check
      _
    $region7: #{tpu_custom_call.1} parent=1 // pred_check_branch
      %12 = sbr.rel (0) target = $region9
    $region8: #{tpu_custom_call.1} parent=1 // pred_region
      %14 = vsyncadd [#allocation3], 0
      %s15 = sshll.u32 %s1, 4
      %s16 = int_to_ptr.hbm [resolvable:$true] %s15
      %s17 = sshll.u32 [#allocation2], 4
      %s18 = int_to_ptr.vmem [resolvable:$true] %s17
      %23 = dma.hbm_to_vmem [thread:$0]  %s16, 1664, %s18, [#allocation3], 128, 128, 8
    $region9: #{tpu_custom_call.1} parent=1 // pred_fallthru
      _
    // Predicated region
    $region10: #{tpu_custom_call.1} parent=1 // pred_check
      _
    $region11: #{tpu_custom_call.1} parent=1 // pred_check_branch
      %25 = sbr.rel (0) target = $region13
    $region12: #{tpu_custom_call.1} parent=1 // pred_region
      %27 = dma.done [#allocation3], 1664
    $region13: #{tpu_custom_call.1} parent=1 // pred_fallthru
      _
    %v28 = vld [vmem:[#allocation2] sm:$0xff]
    %v29 = vld [vmem:[#allocation2 + $0x8] sm:$0xff]
    %v30 = vld [vmem:[#allocation2 + $0x10] sm:$0xff]
    %v31 = vld [vmem:[#allocation2 + $0x18] sm:$0xff]
    %v32 = vld [vmem:[#allocation2 + $0x20] sm:$0xff]
    %v33 = vld [vmem:[#allocation2 + $0x28] sm:$0xff]
    %v34 = vld [vmem:[#allocation2 + $0x30] sm:$0xff]
    %v35 = vld [vmem:[#allocation2 + $0x38] sm:$0xff]
    %v36 = vld [vmem:[#allocation2 + $0x40] sm:$0xff]
    %v37 = vld [vmem:[#allocation2 + $0x48] sm:$0xff]
    %v38 = vld [vmem:[#allocation2 + $0x50] sm:$0xff]
    %v39 = vld [vmem:[#allocation2 + $0x58] sm:$0xff]
    %v40 = vld [vmem:[#allocation2 + $0x60] sm:$0x1]
    %v41 = vld [vmem:[%s0] sm:$0xff]
    %v42 = vld [vmem:[%s0 + $0x8] sm:$0xff]
    %v43 = vld [vmem:[%s0 + $0x10] sm:$0xff]
    %v44 = vld [vmem:[%s0 + $0x18] sm:$0xff]
    %v45 = vld [vmem:[%s0 + $0x20] sm:$0xff]
    %v46 = vld [vmem:[%s0 + $0x28] sm:$0xff]
    %v47 = vld [vmem:[%s0 + $0x30] sm:$0xff]
    %v48 = vld [vmem:[%s0 + $0x38] sm:$0xff]
    %v49 = vlaneseq
    %v50 = vand.u32 %v49, 127
    %51 = vset.pattern.permute.xlu0 0
    %52 = vperm.xlu0 %51, %v41
    %v53 = vpop.permute.xlu0 %52
    %54 = vset.pattern.permute.xlu0 0
    %55 = vperm.xlu0 %54, %v42
    %v56 = vpop.permute.xlu0 %55
    %57 = vset.pattern.permute.xlu0 0
    %58 = vperm.xlu0 %57, %v43
    %v59 = vpop.permute.xlu0 %58
    %60 = vset.pattern.permute.xlu0 0
    %61 = vperm.xlu0 %60, %v44
    %v62 = vpop.permute.xlu0 %61
    %63 = vset.pattern.permute.xlu0 0
    %64 = vperm.xlu0 %63, %v45
    %v65 = vpop.permute.xlu0 %64
    %66 = vset.pattern.permute.xlu0 0
    %67 = vperm.xlu0 %66, %v46
    %v68 = vpop.permute.xlu0 %67
    %69 = vset.pattern.permute.xlu0 0
    %70 = vperm.xlu0 %69, %v47
    %v71 = vpop.permute.xlu0 %70
    %72 = vset.pattern.permute.xlu0 0
    %73 = vperm.xlu0 %72, %v48
    %v74 = vpop.permute.xlu0 %73
    %vm75 = vcmp.eq.s32.totalorder %v53, %v50
    %vm76 = vcmp.eq.s32.totalorder %v56, %v50
    %vm77 = vcmp.eq.s32.totalorder %v59, %v50
    %vm78 = vcmp.eq.s32.totalorder %v62, %v50
    %vm79 = vcmp.eq.s32.totalorder %v65, %v50
    %vm80 = vcmp.eq.s32.totalorder %v68, %v50
    %vm81 = vcmp.eq.s32.totalorder %v71, %v50
    %vm82 = vcmp.eq.s32.totalorder %v74, %v50
    %v83 = vsel %vm75, 1, 0
    %v84 = vsel %vm76, 1, 0
    %v85 = vsel %vm77, 1, 0
    %v86 = vsel %vm78, 1, 0
    %v87 = vsel %vm79, 1, 0
    %v88 = vsel %vm80, 1, 0
    %v89 = vsel %vm81, 1, 0
    %v90 = vsel %vm82, 1, 0
    %v91 = vcvt.s32.f32 %v83
    %v92 = vcvt.s32.f32 %v84
    %v93 = vcvt.s32.f32 %v85
    %v94 = vcvt.s32.f32 %v86
    %v95 = vcvt.s32.f32 %v87
    %v96 = vcvt.s32.f32 %v88
    %v97 = vcvt.s32.f32 %v89
    %v98 = vcvt.s32.f32 %v90
    %vm99 = vcmask 261120
    %v101 = vsel %vm99, %v91, 0
    %v104 = vsel %vm99, %v92, 0
    %v107 = vsel %vm99, %v93, 0
    %v110 = vsel %vm99, %v94, 0
    %v113 = vsel %vm99, %v95, 0
    %v116 = vsel %vm99, %v96, 0
    %v119 = vsel %vm99, %v97, 0
    %v122 = vsel %vm99, %v98, 0
    %124 = vmatpush.msra.mxu0 0.0
    %125 = vmatpush.msra.mxu0 0.0
    %126 = vmatpush.msra.mxu0 0.0
    %127 = vmatpush.msra.mxu0 0.0
    %128 = vmatpush.msra.mxu0 0.0
    %129 = vmatpush.msra.mxu0 0.0
    %130 = vmatpush.msra.mxu0 0.0
    %131 = vmatpush.msra.mxu0 0.0
    %132 = vmatpush.msra.mxu0 0.0
    %133 = vmatpush.msra.mxu0 0.0
    %134 = vmatpush.msra.mxu0 0.0
    %135 = vmatpush.msra.mxu0 0.0
    %136 = vmatpush.msra.mxu0 %v31
    %137 = vmatpush.msra.mxu0 %v30
    %138 = vmatpush.msra.mxu0 %v29
    %139 = vmatpush.msra.mxu0 %v28
    %140 = vmatmul.f32.gmra.mxu0 %v101
    %v141 = vpop.f32.mrf.mxu0
    %v142 = vadd.f32 0.0, %v141
    %143 = vmatmul.f32.gmra.mxu0 %v104
    %v144 = vpop.f32.mrf.mxu0
    %v145 = vadd.f32 0.0, %v144
    %146 = vmatmul.f32.gmra.mxu0 %v107
    %v147 = vpop.f32.mrf.mxu0
    %v148 = vadd.f32 0.0, %v147
    %149 = vmatmul.f32.gmra.mxu0 %v110
    %v150 = vpop.f32.mrf.mxu0
    %v151 = vadd.f32 0.0, %v150
    %152 = vmatmul.f32.gmra.mxu0 %v113
    %v153 = vpop.f32.mrf.mxu0
    %v154 = vadd.f32 0.0, %v153
    %155 = vmatmul.f32.gmra.mxu0 %v116
    %v156 = vpop.f32.mrf.mxu0
    %v157 = vadd.f32 0.0, %v156
    %158 = vmatmul.f32.gmra.mxu0 %v119
    %v159 = vpop.f32.mrf.mxu0
    %v160 = vadd.f32 0.0, %v159
    %161 = vmatmul.f32.gmra.mxu0 %v122
    %v162 = vpop.f32.mrf.mxu0
    %v163 = vadd.f32 0.0, %v162
    %164 = vdwg.mxu0
    %v166 = vsel %vm99, 0.0, 0
    %168 = vmatpush.msra.mxu0 0.0
    %169 = vmatpush.msra.mxu0 0.0
    %170 = vmatpush.msra.mxu0 0.0
    %171 = vmatpush.msra.mxu0 0.0
    %172 = vmatpush.msra.mxu0 0.0
    %173 = vmatpush.msra.mxu0 0.0
    %174 = vmatpush.msra.mxu0 0.0
    %175 = vmatpush.msra.mxu0 0.0
    %176 = vmatpush.msra.mxu0 0.0
    %177 = vmatpush.msra.mxu0 0.0
    %178 = vmatpush.msra.mxu0 0.0
    %179 = vmatpush.msra.mxu0 0.0
    %180 = vmatpush.msra.mxu0 %v35
    %181 = vmatpush.msra.mxu0 %v34
    %182 = vmatpush.msra.mxu0 %v33
    %183 = vmatpush.msra.mxu0 %v32
    %184 = vmatmul.f32.gmra.mxu0 %v166
    %v185 = vpop.f32.mrf.mxu0
    %v186 = vadd.f32 0.0, %v185
    %187 = vdwg.mxu0
    %v188 = vadd.f32 %v142, %v186
    %v189 = vxor.u32 %v188, 2147483648
    %v190 = vmul.f32 %v189, 1.442695
    %v191 = vpow.pop %v190
    %v192 = vadd.f32 %v191, 1.0
    %v193 = vrcp.pop %v192
    %v194 = vmul.f32 %v192, %v193
    %v195 = vsub.f32 1.0, %v194
    %v196 = vmul.f32 %v193, %v195
    %v197 = vadd.f32 %v193, %v196
    %vm198 = vweird.f32 %v192
    %vm199 = vweird.f32 %v193
    %vm200 = vmor %vm198, %vm199
    %v201 = vsel %vm200, %v193, %v197
    %v202 = vand.u32 2147483647, %v192
    %vm203 = vcmp.eq.f32.partialorder %v202, 8.507059e+37
    %v204 = vand.u32 %v192, 2147483648
    %v205 = vor.u32 1.1754944e-38, %v204
    %v206 = vsel %vm203, %v205, %v201
    %v207 = vmul.f32 1.0, %v206
    %v208 = vtanh.pop %v188
    %v209 = vmul.f32 %v207, 0.0
    %211 = vrot.lane.b32.xlu0 %v208, 64
    %v212 = vpop.permute.xlu0 %211
    %v214 = vmul.f32 %v207, %v212
    %216 = vrot.lane.b32.xlu0 %v214, 32
    %v217 = vpop.permute.xlu0 %216
    %v219 = vadd.f32 %v209, %v217
    %v220 = vtanh.pop %v219
    %222 = vrot.lane.b32.xlu0 %v220, 64
    %v223 = vpop.permute.xlu0 %222
    %v225 = vmul.f32 %v207, %v223
    %227 = vrot.lane.b32.xlu0 %v225, 32
    %v228 = vpop.permute.xlu0 %227
    %v229 = vsel %vm99, %v228, 0
    %231 = vmatpush.msra.mxu0 0.0
    %232 = vmatpush.msra.mxu0 0.0
    %233 = vmatpush.msra.mxu0 0.0
    %234 = vmatpush.msra.mxu0 0.0
    %235 = vmatpush.msra.mxu0 0.0
    %236 = vmatpush.msra.mxu0 0.0
    %237 = vmatpush.msra.mxu0 0.0
    %238 = vmatpush.msra.mxu0 0.0
    %239 = vmatpush.msra.mxu0 0.0
    %240 = vmatpush.msra.mxu0 0.0
    %241 = vmatpush.msra.mxu0 0.0
    %242 = vmatpush.msra.mxu0 0.0
    %243 = vmatpush.msra.mxu0 %v35
    %244 = vmatpush.msra.mxu0 %v34
    %245 = vmatpush.msra.mxu0 %v33
    %246 = vmatpush.msra.mxu0 %v32
    %247 = vmatmul.f32.gmra.mxu0 %v229
    %v248 = vpop.f32.mrf.mxu0
    %v249 = vadd.f32 0.0, %v248
    %250 = vdwg.mxu0
    %v251 = vadd.f32 %v145, %v249
    %v252 = vxor.u32 %v251, 2147483648
    %v253 = vmul.f32 %v252, 1.442695
    %v254 = vpow.pop %v253
    %v255 = vadd.f32 %v254, 1.0
    %v256 = vrcp.pop %v255
    %v257 = vmul.f32 %v255, %v256
    %v258 = vsub.f32 1.0, %v257
    %v259 = vmul.f32 %v256, %v258
    %v260 = vadd.f32 %v256, %v259
    %vm261 = vweird.f32 %v255
    %vm262 = vweird.f32 %v256
    %vm263 = vmor %vm261, %vm262
    %v264 = vsel %vm263, %v256, %v260
    %v265 = vand.u32 2147483647, %v255
    %vm266 = vcmp.eq.f32.partialorder %v265, 8.507059e+37
    %v267 = vand.u32 %v255, 2147483648
    %v268 = vor.u32 1.1754944e-38, %v267
    %v269 = vsel %vm266, %v268, %v264
    %v270 = vmul.f32 1.0, %v269
    %v271 = vtanh.pop %v251
    %v272 = vmul.f32 %v270, %v219
    %274 = vrot.lane.b32.xlu0 %v271, 64
    %v275 = vpop.permute.xlu0 %274
    %v277 = vmul.f32 %v270, %v275
    %279 = vrot.lane.b32.xlu0 %v277, 32
    %v280 = vpop.permute.xlu0 %279
    %v282 = vadd.f32 %v272, %v280
    %v283 = vtanh.pop %v282
    %285 = vrot.lane.b32.xlu0 %v283, 64
    %v286 = vpop.permute.xlu0 %285
    %v288 = vmul.f32 %v270, %v286
    %290 = vrot.lane.b32.xlu0 %v288, 32
    %v291 = vpop.permute.xlu0 %290
    %v292 = vsel %vm99, %v291, 0
    %294 = vmatpush.msra.mxu0 0.0
    %295 = vmatpush.msra.mxu0 0.0
    %296 = vmatpush.msra.mxu0 0.0
    %297 = vmatpush.msra.mxu0 0.0
    %298 = vmatpush.msra.mxu0 0.0
    %299 = vmatpush.msra.mxu0 0.0
    %300 = vmatpush.msra.mxu0 0.0
    %301 = vmatpush.msra.mxu0 0.0
    %302 = vmatpush.msra.mxu0 0.0
    %303 = vmatpush.msra.mxu0 0.0
    %304 = vmatpush.msra.mxu0 0.0
    %305 = vmatpush.msra.mxu0 0.0
    %306 = vmatpush.msra.mxu0 %v35
    %307 = vmatpush.msra.mxu0 %v34
    %308 = vmatpush.msra.mxu0 %v33
    %309 = vmatpush.msra.mxu0 %v32
    %310 = vmatmul.f32.gmra.mxu0 %v292
    %v311 = vpop.f32.mrf.mxu0
    %v312 = vadd.f32 0.0, %v311
    %313 = vdwg.mxu0
    %v314 = vadd.f32 %v148, %v312
    %v315 = vxor.u32 %v314, 2147483648
    %v316 = vmul.f32 %v315, 1.442695
    %v317 = vpow.pop %v316
    %v318 = vadd.f32 %v317, 1.0
    %v319 = vrcp.pop %v318
    %v320 = vmul.f32 %v318, %v319
    %v321 = vsub.f32 1.0, %v320
    %v322 = vmul.f32 %v319, %v321
    %v323 = vadd.f32 %v319, %v322
    %vm324 = vweird.f32 %v318
    %vm325 = vweird.f32 %v319
    %vm326 = vmor %vm324, %vm325
    %v327 = vsel %vm326, %v319, %v323
    %v328 = vand.u32 2147483647, %v318
    %vm329 = vcmp.eq.f32.partialorder %v328, 8.507059e+37
    %v330 = vand.u32 %v318, 2147483648
    %v331 = vor.u32 1.1754944e-38, %v330
    %v332 = vsel %vm329, %v331, %v327
    %v333 = vmul.f32 1.0, %v332
    %v334 = vtanh.pop %v314
    %v335 = vmul.f32 %v333, %v282
    %337 = vrot.lane.b32.xlu0 %v334, 64
    %v338 = vpop.permute.xlu0 %337
    %v340 = vmul.f32 %v333, %v338
    %342 = vrot.lane.b32.xlu0 %v340, 32
    %v343 = vpop.permute.xlu0 %342
    %v345 = vadd.f32 %v335, %v343
    %v346 = vtanh.pop %v345
    %348 = vrot.lane.b32.xlu0 %v346, 64
    %v349 = vpop.permute.xlu0 %348
    %v351 = vmul.f32 %v333, %v349
    %353 = vrot.lane.b32.xlu0 %v351, 32
    %v354 = vpop.permute.xlu0 %353
    %v355 = vsel %vm99, %v354, 0
    %357 = vmatpush.msra.mxu0 0.0
    %358 = vmatpush.msra.mxu0 0.0
    %359 = vmatpush.msra.mxu0 0.0
    %360 = vmatpush.msra.mxu0 0.0
    %361 = vmatpush.msra.mxu0 0.0
    %362 = vmatpush.msra.mxu0 0.0
    %363 = vmatpush.msra.mxu0 0.0
    %364 = vmatpush.msra.mxu0 0.0
    %365 = vmatpush.msra.mxu0 0.0
    %366 = vmatpush.msra.mxu0 0.0
    %367 = vmatpush.msra.mxu0 0.0
    %368 = vmatpush.msra.mxu0 0.0
    %369 = vmatpush.msra.mxu0 %v35
    %370 = vmatpush.msra.mxu0 %v34
    %371 = vmatpush.msra.mxu0 %v33
    %372 = vmatpush.msra.mxu0 %v32
    %373 = vmatmul.f32.gmra.mxu0 %v355
    %v374 = vpop.f32.mrf.mxu0
    %v375 = vadd.f32 0.0, %v374
    %376 = vdwg.mxu0
    %v377 = vadd.f32 %v151, %v375
    %v378 = vxor.u32 %v377, 2147483648
    %v379 = vmul.f32 %v378, 1.442695
    %v380 = vpow.pop %v379
    %v381 = vadd.f32 %v380, 1.0
    %v382 = vrcp.pop %v381
    %v383 = vmul.f32 %v381, %v382
    %v384 = vsub.f32 1.0, %v383
    %v385 = vmul.f32 %v382, %v384
    %v386 = vadd.f32 %v382, %v385
    %vm387 = vweird.f32 %v381
    %vm388 = vweird.f32 %v382
    %vm389 = vmor %vm387, %vm388
    %v390 = vsel %vm389, %v382, %v386
    %v391 = vand.u32 2147483647, %v381
    %vm392 = vcmp.eq.f32.partialorder %v391, 8.507059e+37
    %v393 = vand.u32 %v381, 2147483648
    %v394 = vor.u32 1.1754944e-38, %v393
    %v395 = vsel %vm392, %v394, %v390
    %v396 = vmul.f32 1.0, %v395
    %v397 = vtanh.pop %v377
    %v398 = vmul.f32 %v396, %v345
    %400 = vrot.lane.b32.xlu0 %v397, 64
    %v401 = vpop.permute.xlu0 %400
    %v403 = vmul.f32 %v396, %v401
    %405 = vrot.lane.b32.xlu0 %v403, 32
    %v406 = vpop.permute.xlu0 %405
    %v408 = vadd.f32 %v398, %v406
    %v409 = vtanh.pop %v408
    %411 = vrot.lane.b32.xlu0 %v409, 64
    %v412 = vpop.permute.xlu0 %411
    %v414 = vmul.f32 %v396, %v412
    %416 = vrot.lane.b32.xlu0 %v414, 32
    %v417 = vpop.permute.xlu0 %416
    %v418 = vsel %vm99, %v417, 0
    %420 = vmatpush.msra.mxu0 0.0
    %421 = vmatpush.msra.mxu0 0.0
    %422 = vmatpush.msra.mxu0 0.0
    %423 = vmatpush.msra.mxu0 0.0
    %424 = vmatpush.msra.mxu0 0.0
    %425 = vmatpush.msra.mxu0 0.0
    %426 = vmatpush.msra.mxu0 0.0
    %427 = vmatpush.msra.mxu0 0.0
    %428 = vmatpush.msra.mxu0 0.0
    %429 = vmatpush.msra.mxu0 0.0
    %430 = vmatpush.msra.mxu0 0.0
    %431 = vmatpush.msra.mxu0 0.0
    %432 = vmatpush.msra.mxu0 %v35
    %433 = vmatpush.msra.mxu0 %v34
    %434 = vmatpush.msra.mxu0 %v33
    %435 = vmatpush.msra.mxu0 %v32
    %436 = vmatmul.f32.gmra.mxu0 %v418
    %v437 = vpop.f32.mrf.mxu0
    %v438 = vadd.f32 0.0, %v437
    %439 = vdwg.mxu0
    %v440 = vadd.f32 %v154, %v438
    %v441 = vxor.u32 %v440, 2147483648
    %v442 = vmul.f32 %v441, 1.442695
    %v443 = vpow.pop %v442
    %v444 = vadd.f32 %v443, 1.0
    %v445 = vrcp.pop %v444
    %v446 = vmul.f32 %v444, %v445
    %v447 = vsub.f32 1.0, %v446
    %v448 = vmul.f32 %v445, %v447
    %v449 = vadd.f32 %v445, %v448
    %vm450 = vweird.f32 %v444
    %vm451 = vweird.f32 %v445
    %vm452 = vmor %vm450, %vm451
    %v453 = vsel %vm452, %v445, %v449
    %v454 = vand.u32 2147483647, %v444
    %vm455 = vcmp.eq.f32.partialorder %v454, 8.507059e+37
    %v456 = vand.u32 %v444, 2147483648
    %v457 = vor.u32 1.1754944e-38, %v456
    %v458 = vsel %vm455, %v457, %v453
    %v459 = vmul.f32 1.0, %v458
    %v460 = vtanh.pop %v440
    %v461 = vmul.f32 %v459, %v408
    %463 = vrot.lane.b32.xlu0 %v460, 64
    %v464 = vpop.permute.xlu0 %463
    %v466 = vmul.f32 %v459, %v464
    %468 = vrot.lane.b32.xlu0 %v466, 32
    %v469 = vpop.permute.xlu0 %468
    %v471 = vadd.f32 %v461, %v469
    %v472 = vtanh.pop %v471
    %474 = vrot.lane.b32.xlu0 %v472, 64
    %v475 = vpop.permute.xlu0 %474
    %v477 = vmul.f32 %v459, %v475
    %479 = vrot.lane.b32.xlu0 %v477, 32
    %v480 = vpop.permute.xlu0 %479
    %v481 = vsel %vm99, %v480, 0
    %483 = vmatpush.msra.mxu0 0.0
    %484 = vmatpush.msra.mxu0 0.0
    %485 = vmatpush.msra.mxu0 0.0
    %486 = vmatpush.msra.mxu0 0.0
    %487 = vmatpush.msra.mxu0 0.0
    %488 = vmatpush.msra.mxu0 0.0
    %489 = vmatpush.msra.mxu0 0.0
    %490 = vmatpush.msra.mxu0 0.0
    %491 = vmatpush.msra.mxu0 0.0
    %492 = vmatpush.msra.mxu0 0.0
    %493 = vmatpush.msra.mxu0 0.0
    %494 = vmatpush.msra.mxu0 0.0
    %495 = vmatpush.msra.mxu0 %v35
    %496 = vmatpush.msra.mxu0 %v34
    %497 = vmatpush.msra.mxu0 %v33
    %498 = vmatpush.msra.mxu0 %v32
    %499 = vmatmul.f32.gmra.mxu0 %v481
    %v500 = vpop.f32.mrf.mxu0
    %v501 = vadd.f32 0.0, %v500
    %502 = vdwg.mxu0
    %v503 = vadd.f32 %v157, %v501
    %v504 = vxor.u32 %v503, 2147483648
    %v505 = vmul.f32 %v504, 1.442695
    %v506 = vpow.pop %v505
    %v507 = vadd.f32 %v506, 1.0
    %v508 = vrcp.pop %v507
    %v509 = vmul.f32 %v507, %v508
    %v510 = vsub.f32 1.0, %v509
    %v511 = vmul.f32 %v508, %v510
    %v512 = vadd.f32 %v508, %v511
    %vm513 = vweird.f32 %v507
    %vm514 = vweird.f32 %v508
    %vm515 = vmor %vm513, %vm514
    %v516 = vsel %vm515, %v508, %v512
    %v517 = vand.u32 2147483647, %v507
    %vm518 = vcmp.eq.f32.partialorder %v517, 8.507059e+37
    %v519 = vand.u32 %v507, 2147483648
    %v520 = vor.u32 1.1754944e-38, %v519
    %v521 = vsel %vm518, %v520, %v516
    %v522 = vmul.f32 1.0, %v521
    %v523 = vtanh.pop %v503
    %v524 = vmul.f32 %v522, %v471
    %526 = vrot.lane.b32.xlu0 %v523, 64
    %v527 = vpop.permute.xlu0 %526
    %v529 = vmul.f32 %v522, %v527
    %531 = vrot.lane.b32.xlu0 %v529, 32
    %v532 = vpop.permute.xlu0 %531
    %v534 = vadd.f32 %v524, %v532
    %v535 = vtanh.pop %v534
    %537 = vrot.lane.b32.xlu0 %v535, 64
    %v538 = vpop.permute.xlu0 %537
    %v540 = vmul.f32 %v522, %v538
    %542 = vrot.lane.b32.xlu0 %v540, 32
    %v543 = vpop.permute.xlu0 %542
    %v544 = vsel %vm99, %v543, 0
    %546 = vmatpush.msra.mxu0 0.0
    %547 = vmatpush.msra.mxu0 0.0
    %548 = vmatpush.msra.mxu0 0.0
    %549 = vmatpush.msra.mxu0 0.0
    %550 = vmatpush.msra.mxu0 0.0
    %551 = vmatpush.msra.mxu0 0.0
    %552 = vmatpush.msra.mxu0 0.0
    %553 = vmatpush.msra.mxu0 0.0
    %554 = vmatpush.msra.mxu0 0.0
    %555 = vmatpush.msra.mxu0 0.0
    %556 = vmatpush.msra.mxu0 0.0
    %557 = vmatpush.msra.mxu0 0.0
    %558 = vmatpush.msra.mxu0 %v35
    %559 = vmatpush.msra.mxu0 %v34
    %560 = vmatpush.msra.mxu0 %v33
    %561 = vmatpush.msra.mxu0 %v32
    %562 = vmatmul.f32.gmra.mxu0 %v544
    %v563 = vpop.f32.mrf.mxu0
    %v564 = vadd.f32 0.0, %v563
    %565 = vdwg.mxu0
    %v566 = vadd.f32 %v160, %v564
    %v567 = vxor.u32 %v566, 2147483648
    %v568 = vmul.f32 %v567, 1.442695
    %v569 = vpow.pop %v568
    %v570 = vadd.f32 %v569, 1.0
    %v571 = vrcp.pop %v570
    %v572 = vmul.f32 %v570, %v571
    %v573 = vsub.f32 1.0, %v572
    %v574 = vmul.f32 %v571, %v573
    %v575 = vadd.f32 %v571, %v574
    %vm576 = vweird.f32 %v570
    %vm577 = vweird.f32 %v571
    %vm578 = vmor %vm576, %vm577
    %v579 = vsel %vm578, %v571, %v575
    %v580 = vand.u32 2147483647, %v570
    %vm581 = vcmp.eq.f32.partialorder %v580, 8.507059e+37
    %v582 = vand.u32 %v570, 2147483648
    %v583 = vor.u32 1.1754944e-38, %v582
    %v584 = vsel %vm581, %v583, %v579
    %v585 = vmul.f32 1.0, %v584
    %v586 = vtanh.pop %v566
    %v587 = vmul.f32 %v585, %v534
    %589 = vrot.lane.b32.xlu0 %v586, 64
    %v590 = vpop.permute.xlu0 %589
    %v592 = vmul.f32 %v585, %v590
    %594 = vrot.lane.b32.xlu0 %v592, 32
    %v595 = vpop.permute.xlu0 %594
    %v597 = vadd.f32 %v587, %v595
    %v598 = vtanh.pop %v597
    %600 = vrot.lane.b32.xlu0 %v598, 64
    %v601 = vpop.permute.xlu0 %600
    %v603 = vmul.f32 %v585, %v601
    %605 = vrot.lane.b32.xlu0 %v603, 32
    %v606 = vpop.permute.xlu0 %605
    %v607 = vsel %vm99, %v606, 0
    %609 = vmatpush.msra.mxu0 0.0
    %610 = vmatpush.msra.mxu0 0.0
    %611 = vmatpush.msra.mxu0 0.0
    %612 = vmatpush.msra.mxu0 0.0
    %613 = vmatpush.msra.mxu0 0.0
    %614 = vmatpush.msra.mxu0 0.0
    %615 = vmatpush.msra.mxu0 0.0
    %616 = vmatpush.msra.mxu0 0.0
    %617 = vmatpush.msra.mxu0 0.0
    %618 = vmatpush.msra.mxu0 0.0
    %619 = vmatpush.msra.mxu0 0.0
    %620 = vmatpush.msra.mxu0 0.0
    %621 = vmatpush.msra.mxu0 %v35
    %622 = vmatpush.msra.mxu0 %v34
    %623 = vmatpush.msra.mxu0 %v33
    %624 = vmatpush.msra.mxu0 %v32
    %625 = vmatmul.f32.gmra.mxu0 %v607
    %v626 = vpop.f32.mrf.mxu0
    %v627 = vadd.f32 0.0, %v626
    %628 = vdwg.mxu0
    %v629 = vadd.f32 %v163, %v627
    %v630 = vxor.u32 %v629, 2147483648
    %v631 = vmul.f32 %v630, 1.442695
    %v632 = vpow.pop %v631
    %v633 = vadd.f32 %v632, 1.0
    %v634 = vrcp.pop %v633
    %v635 = vmul.f32 %v633, %v634
    %v636 = vsub.f32 1.0, %v635
    %v637 = vmul.f32 %v634, %v636
    %v638 = vadd.f32 %v634, %v637
    %vm639 = vweird.f32 %v633
    %vm640 = vweird.f32 %v634
    %vm641 = vmor %vm639, %vm640
    %v642 = vsel %vm641, %v634, %v638
    %v643 = vand.u32 2147483647, %v633
    %vm644 = vcmp.eq.f32.partialorder %v643, 8.507059e+37
    %v645 = vand.u32 %v633, 2147483648
    %v646 = vor.u32 1.1754944e-38, %v645
    %v647 = vsel %vm644, %v646, %v642
    %v648 = vmul.f32 1.0, %v647
    %v649 = vtanh.pop %v629
    %v650 = vmul.f32 %v648, %v597
    %652 = vrot.lane.b32.xlu0 %v649, 64
    %v653 = vpop.permute.xlu0 %652
    %v655 = vmul.f32 %v648, %v653
    %657 = vrot.lane.b32.xlu0 %v655, 32
    %v658 = vpop.permute.xlu0 %657
    %v660 = vadd.f32 %v650, %v658
    %v661 = vtanh.pop %v660
    %663 = vrot.lane.b32.xlu0 %v661, 64
    %v664 = vpop.permute.xlu0 %663
    %v666 = vmul.f32 %v648, %v664
    %668 = vrot.lane.b32.xlu0 %v666, 32
    %v669 = vpop.permute.xlu0 %668
    %v671 = vsel %vm99, %v669, 0.0
    %672 = vadd.xlane.f32.xlu0 %v671
    %v673 = vpop.xlane.xlu0 %672
    %v674 = vrcp.pop 32.0
    %v675 = vmul.f32 32.0, %v674
    %v676 = vsub.f32 1.0, %v675
    %v677 = vmul.f32 %v674, %v676
    %v678 = vadd.f32 %v674, %v677
    %vm679 = vweird.f32 %v674
    %v680 = vsel %vm679, %v674, %v678
    %v681 = vmul.f32 %v673, %v680
    %v682 = vsub.f32 %v666, %v681
    %v683 = vmul.f32 %v682, %v682
    %685 = vrot.lane.b32.xlu0 %v683, 32
    %v686 = vpop.permute.xlu0 %685
    %v688 = vsel %vm99, %v686, 0.0
    %689 = vadd.xlane.f32.xlu0 %v688
    %v690 = vpop.xlane.xlu0 %689
    %v691 = vmul.f32 %v690, %v680
    %v692 = vadd.f32 %v691, 1e-05
    %v693 = vrsqrt.pop %v692
    %v694 = vmul.f32 %v693, %v692
    %v695 = vmul.f32 %v694, %v693
    %v696 = vmul.f32 0.5, %v695
    %v697 = vsub.f32 1.5, %v696
    %v698 = vmul.f32 %v693, %v697
    %vm699 = vweird.f32 %v692
    %vm700 = vweird.f32 %v693
    %vm701 = vmor %vm699, %vm700
    %v702 = vsel %vm701, %v693, %v698
    %v703 = vmul.f32 %v682, %v702
    %v704 = vperm.slane %v40, 0
    %706 = vrot.lane.b32.xlu0 %v703, 32
    %v707 = vpop.permute.xlu0 %706
    %v708 = vsel %vm99, %v707, 0
    %710 = vmatpush.msra.mxu0 0.0
    %711 = vmatpush.msra.mxu0 0.0
    %712 = vmatpush.msra.mxu0 0.0
    %713 = vmatpush.msra.mxu0 0.0
    %714 = vmatpush.msra.mxu0 0.0
    %715 = vmatpush.msra.mxu0 0.0
    %716 = vmatpush.msra.mxu0 0.0
    %717 = vmatpush.msra.mxu0 0.0
    %718 = vmatpush.msra.mxu0 0.0
    %719 = vmatpush.msra.mxu0 0.0
    %720 = vmatpush.msra.mxu0 0.0
    %721 = vmatpush.msra.mxu0 0.0
    %722 = vmatpush.msra.mxu0 %v39
    %723 = vmatpush.msra.mxu0 %v38
    %724 = vmatpush.msra.mxu0 %v37
    %725 = vmatpush.msra.mxu0 %v36
    %726 = vmatmul.f32.gmra.mxu0 %v708
    %v727 = vpop.f32.mrf.mxu0
    %v728 = vadd.f32 %v704, %v727
    %729 = vdwg.mxu0
    %730 = vst [vmem:[#allocation5] sm:$0xff] %v728
    // Predicated region
    $region14: #{tpu_custom_call.1} parent=1 // pred_check
      _
    $region15: #{tpu_custom_call.1} parent=1 // pred_check_branch
      %732 = sbr.rel (0) target = $region17
    $region16: #{tpu_custom_call.1} parent=1 // pred_region
      %734 = vsyncadd [#allocation4], 0
      %s736 = sshll.u32 [#allocation5], 4
      %s737 = int_to_ptr.vmem [resolvable:$true] %s736
      %s738 = sshll.u32 %s2, 4
      %s739 = int_to_ptr.hbm [resolvable:$true] %s738
      %741 = dma.vmem_to_hbm [thread:$0]  %s737, 128, %s739, [#allocation4]
    $region17: #{tpu_custom_call.1} parent=1 // pred_fallthru
      _
    // Predicated region
    $region18: #{tpu_custom_call.1} parent=1 // pred_check
      _
    $region19: #{tpu_custom_call.1} parent=1 // pred_check_branch
      %743 = sbr.rel (0) target = $region21
    $region20: #{tpu_custom_call.1} parent=1 // pred_region
      %745 = dma.done [#allocation4], 128
    $region21: #{tpu_custom_call.1} parent=1 // pred_fallthru
      _
    %746 = vsyncpa [#allocation3], 1
    %747 = vsyncpa [#allocation4], 1

</llo_original>
